<compile_context>
chip_gen: v7x
topology: tpu7x:2x2x1
jax: 0.10.0
libtpu: 0.0.40
codegen_flags: <defaults>
</compile_context>

<pallas_src>
import functools

import jax
import jax.numpy as jnp
from jax.experimental import pallas as pl
from jax.experimental.pallas import tpu as pltpu


_LANE = 128  # TPU vreg lane width
_SUB = 8     # TPU vreg sublane count (f32)


def _mlp_kernel(w1_ref, w2_ref, xt_ref, o_ref):
    """Unrolled VPU MLP with batch on (sublane, lane).

    w1_ref: (9,) f32 in SMEM  -- linear1.weight, row-major torch (out, in)
    w2_ref: (3,) f32 in SMEM  -- linear2.weight[0, :]
    xt_ref: (3, S, 128) f32 in VMEM -- (feature, sublane-batch, lane-batch)
    o_ref : (S, 128) f32 in VMEM    -- lane-dense, full-sublane output tile
    """
    x0 = xt_ref[0]   # (S, 128) full vreg tiles
    x1 = xt_ref[1]
    x2 = xt_ref[2]

    # Fully unrolled: h_j = sum_k x_k * W1[j,k]; relu; acc += h_j * W2[0,j].
    # j = 0 term seeds the accumulator (saves a zeros + add).
    h = x0 * w1_ref[0] + x1 * w1_ref[1] + x2 * w1_ref[2]
    out = jnp.maximum(h, 0.0) * w2_ref[0]
    for j in (1, 2):
        h = (x0 * w1_ref[3 * j]
             + x1 * w1_ref[3 * j + 1]
             + x2 * w1_ref[3 * j + 2])
        out = out + jnp.maximum(h, 0.0) * w2_ref[j]

    o_ref[...] = out


@functools.partial(jax.jit, static_argnames=("block_rows", "force_pallas"))
def mymodel_forward(x, w1, w2, *, block_rows=2048, force_pallas=False):
    """x: (B, 3) f32; w1: (3, 3) torch (out,in); w2: (1, 3) torch (out,in).

    block_rows = sublane rows per grid step; each step processes
    block_rows * 128 batch elements (~block_rows * 2 KiB of HBM traffic).
    """
    B = x.shape[0]

    # Small-batch bypass: for tiny B the pallas_call launch/pipeline setup
    # dominates; a fused XLA expression is as fast or faster.
    if not force_pallas and B < 4096:
        return jnp.maximum(x @ w1.T, 0.0) @ w2.T

    # Batch -> (sublane-block, lane) layout.
    bp = pl.cdiv(B, _LANE) * _LANE
    nblk = bp // _LANE
    s_rows = min(block_rows, nblk)
    if s_rows < nblk:
        # Partial blocks need the (8,128) divisibility on the last two dims.
        s_rows = max(_SUB, (s_rows // _SUB) * _SUB)
        nblk_p = pl.cdiv(nblk, s_rows) * s_rows
    else:
        nblk_p = nblk
    bp_p = nblk_p * _LANE
    grid = (nblk_p // s_rows,)

    # Feature-major, padded activations: (3, bp_p) -> (3, nblk_p, 128).
    # (jnp.pad instead of zeros + dynamic-update-slice: single HBM pass.)
    xt3 = jnp.pad(x.T, ((0, 0), (0, bp_p - B))).reshape(3, nblk_p, _LANE)

    # Size the scoped VMEM limit to the double-buffered working set (+slack),
    # capped at 48 MiB so it stays within v7x's 64 MiB physical VMEM.
    in_block_bytes = 3 * s_rows * _LANE * 4
    out_block_bytes = s_rows * _LANE * 4
    vmem_limit = int(min(max(2 * (in_block_bytes + out_block_bytes) + (2 << 20),
                             16 << 20),
                         48 << 20))

    out = pl.pallas_call(
        _mlp_kernel,
        grid=grid,
        out_shape=jax.ShapeDtypeStruct((nblk_p, _LANE), jnp.float32),
        in_specs=[
            # 12 weight scalars -> flat 1-D SMEM (minimal padding, no DMAs).
            pl.BlockSpec(memory_space=pltpu.MemorySpace.SMEM),  # w1 flat (9,)
            pl.BlockSpec(memory_space=pltpu.MemorySpace.SMEM),  # w2 flat (3,)
            # Activations: full-(sublane,lane) tiles over the batch axis.
            pl.BlockSpec((3, s_rows, _LANE), lambda i: (0, i, 0)),
        ],
        out_specs=pl.BlockSpec((s_rows, _LANE), lambda i: (i, 0)),
        compiler_params=pltpu.CompilerParams(
            # Batch-tile axis is independent -> shard across TCs on v7x.
            dimension_semantics=("parallel",),
            vmem_limit_bytes=vmem_limit,
        ),
    )(w1.reshape(-1), w2.reshape(-1), xt3)

    # Contiguous flatten/slice/reshape back to (B, 1): no transpose copy.
    return out.reshape(-1)[:B].reshape(B, 1)


if __name__ == "__main__":
    key = jax.random.PRNGKey(0)
    k_x, k_w1, k_w2 = jax.random.split(key, 3)

    bound = 1.0 / jnp.sqrt(3.0)  # nn.Linear default uniform bound 1/sqrt(fan_in)
    w1 = jax.random.uniform(k_w1, (3, 3), minval=-bound, maxval=bound,
                            dtype=jnp.float32)  # linear1.weight (out, in)
    w2 = jax.random.uniform(k_w2, (1, 3), minval=-bound, maxval=bound,
                            dtype=jnp.float32)  # linear2.weight (out, in)

    def ref_fn(xx):
        # QuantStub/DeQuantStub are identity pre-convert.
        return jnp.maximum(xx @ w1.T, 0.0) @ w2.T

    # 1) Tiny batch, force the Pallas path (single (1,128) block, padded tail).
    B0 = 8
    x0 = jax.random.normal(k_x, (B0, 3), dtype=jnp.float32)
    out0 = jax.block_until_ready(mymodel_forward(x0, w1, w2, force_pallas=True))
    assert out0.shape == (B0, 1), out0.shape
    assert jnp.allclose(out0, ref_fn(x0), atol=1e-5, rtol=1e-5)

    # 2) Batch spanning several (sublane, lane) blocks + multi-step grid.
    B1 = 1100
    x1 = jax.random.normal(jax.random.fold_in(k_x, 1), (B1, 3),
                           dtype=jnp.float32)
    out1 = jax.block_until_ready(
        mymodel_forward(x1, w1, w2, block_rows=8, force_pallas=True))
    assert out1.shape == (B1, 1), out1.shape
    assert jnp.allclose(out1, ref_fn(x1), atol=1e-5, rtol=1e-5)

    # 3) Default path: small-batch XLA bypass gives the same answer.
    out2 = jax.block_until_ready(mymodel_forward(x0, w1, w2))
    assert jnp.allclose(out2, ref_fn(x0), atol=1e-5, rtol=1e-5)

    print("KERNEL_OK")
</pallas_src>

<mosaic_0001>
module attributes {stable_mosaic.version = 11 : i64} {
  func.func @_mlp_kernel(%arg0: i32, %arg1: memref<9xf32, #tpu.memory_space<smem>>, %arg2: memref<3xf32, #tpu.memory_space<smem>>, %arg3: memref<3x1x128xf32, #tpu.memory_space<vmem>>, %arg4: memref<1x128xf32, #tpu.memory_space<vmem>>) attributes {dimension_semantics = [#tpu.dimension_semantics<parallel>], iteration_bounds = array<i64: 1>, scalar_prefetch = 0 : i64, scratch_operands = 0 : i64, tpu.core_type = #tpu.core_type<tc>, window_params = [{transform_indices = @transform_0, window_bounds = array<i64: 9>}, {transform_indices = @transform_1, window_bounds = array<i64: 3>}, {transform_indices = @transform_2, window_bounds = array<i64: 3, 1, 128>}, {transform_indices = @transform_3, window_bounds = array<i64: 1, 128>}]} {
    %c0 = arith.constant 0 : index
    %c0_0 = arith.constant 0 : index
    %c0_1 = arith.constant 0 : index
    %0 = vector.load %arg3[%c0, %c0_0, %c0_1] : memref<3x1x128xf32, #tpu.memory_space<vmem>>, vector<1x1x128xf32>
    %1 = vector.shape_cast %0 : vector<1x1x128xf32> to vector<1x128xf32>
    %c1 = arith.constant 1 : index
    %c0_2 = arith.constant 0 : index
    %c0_3 = arith.constant 0 : index
    %2 = vector.load %arg3[%c1, %c0_2, %c0_3] : memref<3x1x128xf32, #tpu.memory_space<vmem>>, vector<1x1x128xf32>
    %3 = vector.shape_cast %2 : vector<1x1x128xf32> to vector<1x128xf32>
    %c2 = arith.constant 2 : index
    %c0_4 = arith.constant 0 : index
    %c0_5 = arith.constant 0 : index
    %4 = vector.load %arg3[%c2, %c0_4, %c0_5] : memref<3x1x128xf32, #tpu.memory_space<vmem>>, vector<1x1x128xf32>
    %5 = vector.shape_cast %4 : vector<1x1x128xf32> to vector<1x128xf32>
    %c0_6 = arith.constant 0 : index
    %6 = memref.load %arg1[%c0_6] : memref<9xf32, #tpu.memory_space<smem>>
    %7 = vector.broadcast %6 : f32 to vector<1x128xf32>
    %8 = arith.mulf %1, %7 : vector<1x128xf32>
    %c1_7 = arith.constant 1 : index
    %9 = memref.load %arg1[%c1_7] : memref<9xf32, #tpu.memory_space<smem>>
    %10 = vector.broadcast %9 : f32 to vector<1x128xf32>
    %11 = arith.mulf %3, %10 : vector<1x128xf32>
    %12 = arith.addf %8, %11 : vector<1x128xf32>
    %c2_8 = arith.constant 2 : index
    %13 = memref.load %arg1[%c2_8] : memref<9xf32, #tpu.memory_space<smem>>
    %14 = vector.broadcast %13 : f32 to vector<1x128xf32>
    %15 = arith.mulf %5, %14 : vector<1x128xf32>
    %16 = arith.addf %12, %15 : vector<1x128xf32>
    %cst = arith.constant 0.000000e+00 : f32
    %17 = vector.broadcast %cst : f32 to vector<1x128xf32>
    %18 = arith.maximumf %16, %17 : vector<1x128xf32>
    %c0_9 = arith.constant 0 : index
    %19 = memref.load %arg2[%c0_9] : memref<3xf32, #tpu.memory_space<smem>>
    %20 = vector.broadcast %19 : f32 to vector<1x128xf32>
    %21 = arith.mulf %18, %20 : vector<1x128xf32>
    %c3 = arith.constant 3 : index
    %22 = memref.load %arg1[%c3] : memref<9xf32, #tpu.memory_space<smem>>
    %23 = vector.broadcast %22 : f32 to vector<1x128xf32>
    %24 = arith.mulf %1, %23 : vector<1x128xf32>
    %c4 = arith.constant 4 : index
    %25 = memref.load %arg1[%c4] : memref<9xf32, #tpu.memory_space<smem>>
    %26 = vector.broadcast %25 : f32 to vector<1x128xf32>
    %27 = arith.mulf %3, %26 : vector<1x128xf32>
    %28 = arith.addf %24, %27 : vector<1x128xf32>
    %c5 = arith.constant 5 : index
    %29 = memref.load %arg1[%c5] : memref<9xf32, #tpu.memory_space<smem>>
    %30 = vector.broadcast %29 : f32 to vector<1x128xf32>
    %31 = arith.mulf %5, %30 : vector<1x128xf32>
    %32 = arith.addf %28, %31 : vector<1x128xf32>
    %cst_10 = arith.constant 0.000000e+00 : f32
    %33 = vector.broadcast %cst_10 : f32 to vector<1x128xf32>
    %34 = arith.maximumf %32, %33 : vector<1x128xf32>
    %c1_11 = arith.constant 1 : index
    %35 = memref.load %arg2[%c1_11] : memref<3xf32, #tpu.memory_space<smem>>
    %36 = vector.broadcast %35 : f32 to vector<1x128xf32>
    %37 = arith.mulf %34, %36 : vector<1x128xf32>
    %38 = arith.addf %21, %37 : vector<1x128xf32>
    %c6 = arith.constant 6 : index
    %39 = memref.load %arg1[%c6] : memref<9xf32, #tpu.memory_space<smem>>
    %40 = vector.broadcast %39 : f32 to vector<1x128xf32>
    %41 = arith.mulf %1, %40 : vector<1x128xf32>
    %c7 = arith.constant 7 : index
    %42 = memref.load %arg1[%c7] : memref<9xf32, #tpu.memory_space<smem>>
    %43 = vector.broadcast %42 : f32 to vector<1x128xf32>
    %44 = arith.mulf %3, %43 : vector<1x128xf32>
    %45 = arith.addf %41, %44 : vector<1x128xf32>
    %c8 = arith.constant 8 : index
    %46 = memref.load %arg1[%c8] : memref<9xf32, #tpu.memory_space<smem>>
    %47 = vector.broadcast %46 : f32 to vector<1x128xf32>
    %48 = arith.mulf %5, %47 : vector<1x128xf32>
    %49 = arith.addf %45, %48 : vector<1x128xf32>
    %cst_12 = arith.constant 0.000000e+00 : f32
    %50 = vector.broadcast %cst_12 : f32 to vector<1x128xf32>
    %51 = arith.maximumf %49, %50 : vector<1x128xf32>
    %c2_13 = arith.constant 2 : index
    %52 = memref.load %arg2[%c2_13] : memref<3xf32, #tpu.memory_space<smem>>
    %53 = vector.broadcast %52 : f32 to vector<1x128xf32>
    %54 = arith.mulf %51, %53 : vector<1x128xf32>
    %55 = arith.addf %38, %54 : vector<1x128xf32>
    %c0_14 = arith.constant 0 : index
    %c0_15 = arith.constant 0 : index
    %56 = vector.load %arg4[%c0_14, %c0_15] : memref<1x128xf32, #tpu.memory_space<vmem>>, vector<1x128xf32>
    tpu.vector_store %arg4[%c0_14, %c0_15], %55 {strides = array<i32>} : memref<1x128xf32, #tpu.memory_space<vmem>>, vector<1x128xf32>,
    return
  }
  func.func @transform_0(%arg0: i32) -> i32 {
    %c0_i32 = arith.constant 0 : i32
    %c0_i32_0 = arith.constant 0 : i32
    return %c0_i32 : i32
  }
  func.func @transform_1(%arg0: i32) -> i32 {
    %c0_i32 = arith.constant 0 : i32
    %c0_i32_0 = arith.constant 0 : i32
    return %c0_i32 : i32
  }
  func.func @transform_2(%arg0: i32) -> (i32, i32, i32) {
    %c0_i32 = arith.constant 0 : i32
    %c0_i32_0 = arith.constant 0 : i32
    %c0_i32_1 = arith.constant 0 : i32
    return %c0_i32, %arg0, %c0_i32_0 : i32, i32, i32
  }
  func.func @transform_3(%arg0: i32) -> (i32, i32) {
    %c0_i32 = arith.constant 0 : i32
    %c0_i32_0 = arith.constant 0 : i32
    return %arg0, %c0_i32 : i32, i32
  }
}

</mosaic_0001>

<llo_original>
// kernel: mymodel_forward.1
$region0: #{mymodel_forward.1}
  #allocation0 [shape = 'u32[]', space=smem, size = 0x4, offset = 0x4, fixed_abs, tag = 'smem constant byte address 0x4 - core index']
  #allocation1 [shape = 'u32[144,128]{1,0:T(1,128)}', space=vmem, size = 0x12000, scoped, tag = 'internal scratch']
  %s0 = inlined_call_operand.vmem [shape: f32[9], index: 0, kind: input, shape index: {}]
  %s1 = inlined_call_operand.vmem [shape: f32[3], index: 1, kind: input, shape index: {}]
  %s2 = inlined_call_operand.vmem [shape: f32[3,1,128], index: 2, kind: input, shape index: {}]
  %s3 = inlined_call_operand.vmem [shape: f32[1,128], index: 3, kind: output, shape index: {}]
  %s4 = sld [smem:[#allocation0]]
  $region30: #{mymodel_forward.1} parent=0
    _
  %s6 = ssub.s32 1, %s4
  %s7 = scalar_select 0, %s6, %s4
  $region1: #{mymodel_forward.1} parent=0
    #allocation2 [shape = 'u8[512]{0}', space=smem, size = 0x200, scoped, tag = 'input window, operand 0, single buffered']
    #allocation3 [shape = 's32[1]{0}', space=sflag, size = 0x4, scoped, tag = 'scoped memory for mymodel_forward.1']
    #allocation4 [shape = 'u8[512]{0}', space=smem, size = 0x200, scoped, tag = 'input window, operand 1, single buffered']
    #allocation5 [shape = 's32[1]{0}', space=sflag, size = 0x4, scoped, tag = 'scoped memory for mymodel_forward.1']
    %8 = vsyncpa [#allocation3], 0
    %9 = vsyncpa [#allocation5], 0
    // Predicated region
    $region2: #{mymodel_forward.1} parent=1 // pred_check
      _
    $region3: #{mymodel_forward.1} parent=1 // pred_check_branch
      %11 = sbr.rel (0) target = $region5
    $region4: #{mymodel_forward.1} parent=1 // pred_region
      %s13 = ssub.s32 16, 16
      %14 = vsyncadd [#allocation3], %s13
      %s16 = sshll.u32 %s0, 4
      %s17 = int_to_ptr.vmem [resolvable:$true] %s16
      %19 = dma.vmem_to_smem %s17, 16, [#allocation2], [#allocation3]
    $region5: #{mymodel_forward.1} parent=1 // pred_fallthru
      _
    // Predicated region
    $region6: #{mymodel_forward.1} parent=1 // pred_check
      _
    $region7: #{mymodel_forward.1} parent=1 // pred_check_branch
      %21 = sbr.rel (0) target = $region9
    $region8: #{mymodel_forward.1} parent=1 // pred_region
      %s23 = ssub.s32 16, 16
      %24 = vsyncadd [#allocation5], %s23
      %s26 = sshll.u32 %s1, 4
      %s27 = int_to_ptr.vmem [resolvable:$true] %s26
      %29 = dma.vmem_to_smem %s27, 16, [#allocation4], [#allocation5]
    $region9: #{mymodel_forward.1} parent=1 // pred_fallthru
      _
    // Predicated region
    $region10: #{mymodel_forward.1} parent=1 // pred_check
      _
    $region11: #{mymodel_forward.1} parent=1 // pred_check_branch
      %31 = sbr.rel (0) target = $region13
    $region12: #{mymodel_forward.1} parent=1 // pred_region
      _
    $region13: #{mymodel_forward.1} parent=1 // pred_fallthru
      _
    // Predicated region
    $region14: #{mymodel_forward.1} parent=1 // pred_check
      _
    $region15: #{mymodel_forward.1} parent=1 // pred_check_branch
      %33 = sbr.rel (0) target = $region17
    $region16: #{mymodel_forward.1} parent=1 // pred_region
      %34 = dma.done [#allocation3], 16
    $region17: #{mymodel_forward.1} parent=1 // pred_fallthru
      _
    // Predicated region
    $region18: #{mymodel_forward.1} parent=1 // pred_check
      _
    $region19: #{mymodel_forward.1} parent=1 // pred_check_branch
      %36 = sbr.rel (0) target = $region21
    $region20: #{mymodel_forward.1} parent=1 // pred_region
      %37 = dma.done [#allocation5], 16
    $region21: #{mymodel_forward.1} parent=1 // pred_fallthru
      _
    %38 = sfence
    %v39 = vld [vmem:[%s2] sm:$0x1]
    %s40 = scalar_lea.vmem %s2, 1
    %v41 = vld [vmem:[%s40] sm:$0x1]
    %s42 = scalar_lea.vmem %s2, 2
    %v43 = vld [vmem:[%s42] sm:$0x1]
    %s44 = sld [smem:[#allocation2]]
    %v45 = vstv %s44
    %v46 = vmul.f32 %v39, %v45
    %s47 = sld [smem:[#allocation2 + $0x1]]
    %v48 = vstv %s47
    %v49 = vmul.f32 %v41, %v48
    %v50 = vadd.f32 %v46, %v49
    %s51 = sld [smem:[#allocation2 + $0x2]]
    %v52 = vstv %s51
    %v53 = vmul.f32 %v43, %v52
    %v54 = vadd.f32 %v50, %v53
    %v55 = vmax.f32 %v54, 0.0
    %s56 = sld [smem:[#allocation4]]
    %v57 = vstv %s56
    %v58 = vmul.f32 %v55, %v57
    %s59 = sld [smem:[#allocation2 + $0x3]]
    %v60 = vstv %s59
    %v61 = vmul.f32 %v39, %v60
    %s62 = sld [smem:[#allocation2 + $0x4]]
    %v63 = vstv %s62
    %v64 = vmul.f32 %v41, %v63
    %v65 = vadd.f32 %v61, %v64
    %s66 = sld [smem:[#allocation2 + $0x5]]
    %v67 = vstv %s66
    %v68 = vmul.f32 %v43, %v67
    %v69 = vadd.f32 %v65, %v68
    %v70 = vmax.f32 %v69, 0.0
    %s71 = sld [smem:[#allocation4 + $0x1]]
    %v72 = vstv %s71
    %v73 = vmul.f32 %v70, %v72
    %v74 = vadd.f32 %v58, %v73
    %s75 = sld [smem:[#allocation2 + $0x6]]
    %v76 = vstv %s75
    %v77 = vmul.f32 %v39, %v76
    %s78 = sld [smem:[#allocation2 + $0x7]]
    %v79 = vstv %s78
    %v80 = vmul.f32 %v41, %v79
    %v81 = vadd.f32 %v77, %v80
    %s82 = sld [smem:[#allocation2 + $0x8]]
    %v83 = vstv %s82
    %v84 = vmul.f32 %v43, %v83
    %v85 = vadd.f32 %v81, %v84
    %v86 = vmax.f32 %v85, 0.0
    %s87 = sld [smem:[#allocation4 + $0x2]]
    %v88 = vstv %s87
    %v89 = vmul.f32 %v86, %v88
    %v90 = vadd.f32 %v74, %v89
    %91 = vst [vmem:[%s3] sm:$0x1] %v90
    // Predicated region
    $region22: #{mymodel_forward.1} parent=1 // pred_check
      _
    $region23: #{mymodel_forward.1} parent=1 // pred_check_branch
      %93 = sbr.rel (0) target = $region25
    $region24: #{mymodel_forward.1} parent=1 // pred_region
      _
    $region25: #{mymodel_forward.1} parent=1 // pred_fallthru
      _
    // Predicated region
    $region26: #{mymodel_forward.1} parent=1 // pred_check
      _
    $region27: #{mymodel_forward.1} parent=1 // pred_check_branch
      %95 = sbr.rel (0) target = $region29
    $region28: #{mymodel_forward.1} parent=1 // pred_region
      _
    $region29: #{mymodel_forward.1} parent=1 // pred_fallthru
      _
    %96 = vsyncpa [#allocation3], 1
    %97 = vsyncpa [#allocation5], 1

</llo_original>
